<compile_context>
chip_gen: v5e
topology: v5e:2x2
jax: 0.10.0
libtpu: 0.0.40
codegen_flags: <defaults>
</compile_context>

<pallas_src>
import math

import jax
import jax.numpy as jnp
from jax.experimental import pallas as pl
from jax.experimental.pallas import tpu as pltpu


# --------------------------------------------------------------------------- #
# Helpers
# --------------------------------------------------------------------------- #
def _round_up(x, m):
    return ((x + m - 1) // m) * m


def _cdiv(a, b):
    return -(-a // b)


def _fit_tile(dim, align, cap):
    """Tile that is a multiple of `align`, <= cap, minimizing padding waste."""
    cap = max(align, (cap // align) * align)
    if dim <= cap:
        return _round_up(dim, align)
    n_tiles = _cdiv(dim, cap)
    return _round_up(_cdiv(dim, n_tiles), align)


def _largest_tile_dividing(dim, unit, cap):
    """Largest t = k*unit with t | dim and t <= cap.  Assumes dim % unit == 0."""
    m = dim // unit
    best = unit
    for k in range(1, max(1, cap // unit) + 1):
        if m % k == 0:
            best = k * unit
    return best


def _vmem_phys_bytes():
    """Physical VMEM per core (v5e/v6e: 128 MiB, v7x: 64 MiB), with fallback."""
    phys = 64 * 1024 * 1024
    try:
        info = pltpu.get_tpu_info()
        cap = int(getattr(info, "vmem_capacity_bytes", 0) or 0)
        if cap > 0:
            phys = cap
    except Exception:
        pass
    return max(phys, 16 * 1024 * 1024)


# --------------------------------------------------------------------------- #
# Kernels
# --------------------------------------------------------------------------- #
def _matmul_bias_kernel(x_ref, w_ref, b_ref, o_ref):
    # x_ref: (K, Tn)   w_ref: (Tv, K)   b_ref: (Tv, 1) f32   o_ref: (Tv, Tn)
    o_ref[...] = (
        jnp.dot(w_ref[...], x_ref[...], preferred_element_type=jnp.float32)
        + b_ref[...]
    ).astype(o_ref.dtype)


def _matmul_bias_acc_kernel(x_ref, w_ref, b_ref, o_ref, acc_ref):
    # K-tiled variant: accumulate in f32 scratch across the (last) K grid axis.
    k = pl.program_id(2)

    @pl.when(k == 0)
    def _():
        acc_ref[...] = jnp.zeros_like(acc_ref)

    acc_ref[...] += jnp.dot(
        w_ref[...], x_ref[...], preferred_element_type=jnp.float32
    )

    @pl.when(k == pl.num_programs(2) - 1)
    def _():
        o_ref[...] = (acc_ref[...] + b_ref[...]).astype(o_ref.dtype)


# --------------------------------------------------------------------------- #
# Path 1: direct (B, V, L) output — no wrapper transpose/pad
# --------------------------------------------------------------------------- #
def _direct_path(xb, w, b_f32, out_dtype, work_budget, vmem_limit_cap):
    B, U, L = xb.shape
    V = w.shape[0]
    itemsize = jnp.dtype(xb.dtype).itemsize

    # Resident weight + bias (counted double-buffered to be safe).
    w_bytes = 2 * V * U * itemsize + 2 * V * 4

    def panels_bytes(tl):
        return 2 * (U * tl + V * tl) * itemsize  # double-buffered x / out panels

    if L % 128 == 0:
        per_lane = 2 * (U + V) * itemsize
        tl_cap = min(max(0, work_budget - w_bytes) // max(1, per_lane), 4096)
        if tl_cap < 128:
            return None
        tl = _largest_tile_dividing(L, 128, tl_cap)
        # v7x megacore: want >= 2 parallel grid tiles when possible.
        if B * _cdiv(L, tl) < 2 and L >= 256:
            tl = _largest_tile_dividing(L, 128, max(128, (L // 2 // 128) * 128))
    else:
        tl = L  # full-L block (exempt from the 128-lane rule)

    footprint = w_bytes + panels_bytes(tl)
    if footprint > work_budget:
        return None

    n_l = _cdiv(L, tl)
    vmem_limit = int(min(max(footprint + 8 * 2**20, 32 * 2**20), vmem_limit_cap))

    return pl.pallas_call(
        _matmul_bias_kernel,
        out_shape=jax.ShapeDtypeStruct((B, V, L), out_dtype),
        grid_spec=pltpu.PrefetchScalarGridSpec(
            num_scalar_prefetch=0,
            grid=(B, n_l),
            in_specs=[
                pl.BlockSpec((pl.Squeezed(), U, tl), lambda b, j: (b, 0, j)),
                pl.BlockSpec((V, U), lambda b, j: (0, 0)),     # weight, resident
                pl.BlockSpec((V, 1), lambda b, j: (0, 0)),     # bias, resident
            ],
            out_specs=pl.BlockSpec((pl.Squeezed(), V, tl), lambda b, j: (b, 0, j)),
        ),
        compiler_params=pltpu.CompilerParams(
            dimension_semantics=("parallel", "parallel"),
            vmem_limit_bytes=vmem_limit,
        ),
    )(xb, w, b_f32)


# --------------------------------------------------------------------------- #
# Path 2: folded (U, B*L) lane-dense output — small L or very large weight
# --------------------------------------------------------------------------- #
def _folded_path(xb, w, b_f32, out_dtype, work_budget, vmem_limit_cap):
    B, U, L = xb.shape
    V = w.shape[0]
    itemsize = jnp.dtype(xb.dtype).itemsize
    N = B * L

    # (B, U, L) -> (U, B*L): output lanes become B*L (lane-dense).
    x2 = jnp.transpose(xb, (1, 0, 2)).reshape(U, N)

    sub = 16 if itemsize == 2 else 8
    tv_cap = 512 if V > 256 else 256
    tv = _fit_tile(V, sub, tv_cap)
    V_pad = _round_up(V, tv)

    w_p = w if V_pad == V else jnp.pad(w, ((0, V_pad - V), (0, 0)))
    b_p = b_f32 if V_pad == V else jnp.pad(b_f32, ((0, V_pad - V), (0, 0)))

    # ---- Mode 1: full-K panels (no reduction grid axis, no accumulator) -----
    tn_cap = 4096
    tn_full = None
    while tn_cap >= 128:
        tn = _fit_tile(N, 128, tn_cap)
        fp = 2 * (tv * U + U * tn + tv * tn) * itemsize + 2 * tv * 4
        if fp <= work_budget:
            tn_full, fp_full = tn, fp
            break
        tn_cap //= 2

    if tn_full is not None:
        tn = tn_full
        N_pad = _round_up(N, tn)
        # v7x megacore occupancy.
        if (V_pad // tv) * (N_pad // tn) < 2 and N >= 256:
            tn = _fit_tile(N, 128, max(128, _round_up(_cdiv(N, 2), 128)))
            N_pad = _round_up(N, tn)
            fp_full = 2 * (tv * U + U * tn + tv * tn) * itemsize + 2 * tv * 4

        x2p = x2 if N_pad == N else jnp.pad(x2, ((0, 0), (0, N_pad - N)))
        vmem_limit = int(min(max(fp_full + 8 * 2**20, 32 * 2**20), vmem_limit_cap))

        out2 = pl.pallas_call(
            _matmul_bias_kernel,
            out_shape=jax.ShapeDtypeStruct((V_pad, N_pad), out_dtype),
            grid_spec=pltpu.PrefetchScalarGridSpec(
                num_scalar_prefetch=0,
                grid=(V_pad // tv, N_pad // tn),
                in_specs=[
                    pl.BlockSpec((U, tn), lambda i, j: (0, j)),   # x2 (full K)
                    pl.BlockSpec((tv, U), lambda i, j: (i, 0)),   # W, resident per i
                    pl.BlockSpec((tv, 1), lambda i, j: (i, 0)),   # bias
                ],
                out_specs=pl.BlockSpec((tv, tn), lambda i, j: (i, j)),
            ),
            compiler_params=pltpu.CompilerParams(
                dimension_semantics=("parallel", "parallel"),
                vmem_limit_bytes=vmem_limit,
            ),
        )(x2p, w_p, b_p)
        out2 = out2[:V, :N]
        return out2.reshape(V, B, L).transpose(1, 0, 2)

    # ---- Mode 2: K-tiled with f32 accumulator (very large U and/or V) -------
    tn_cap, tk_cap = 2048, 2048
    while True:
        tn = _fit_tile(N, 128, tn_cap)
        tk = _fit_tile(U, 128, tk_cap)
        fp = (2 * (tv * tk + tk * tn + tv * tn) * itemsize
              + tv * tn * 4 + 2 * tv * 4)
        if fp <= work_budget or (tn_cap <= 128 and tk_cap <= 128 and tv <= 2 * sub):
            break
        if tn_cap > 128 and tn_cap >= tk_cap:
            tn_cap //= 2
        elif tk_cap > 128:
            tk_cap //= 2
        else:
            tv = max(sub, tv // 2)

    N_pad = _round_up(N, tn)
    U_pad = _round_up(U, tk)
    V_pad2 = _round_up(V, tv)
    if V_pad2 != V_pad:
        w_p = w if V_pad2 == V else jnp.pad(w, ((0, V_pad2 - V), (0, 0)))
        b_p = b_f32 if V_pad2 == V else jnp.pad(b_f32, ((0, V_pad2 - V), (0, 0)))
        V_pad = V_pad2
    x2p = x2
    if (U_pad, N_pad) != (U, N):
        x2p = jnp.pad(x2, ((0, U_pad - U), (0, N_pad - N)))
    if U_pad != U:
        w_p = jnp.pad(w_p, ((0, 0), (0, U_pad - U)))

    vmem_limit = int(min(max(fp + 8 * 2**20, 32 * 2**20), vmem_limit_cap))

    out2 = pl.pallas_call(
        _matmul_bias_acc_kernel,
        out_shape=jax.ShapeDtypeStruct((V_pad, N_pad), out_dtype),
        grid_spec=pltpu.PrefetchScalarGridSpec(
            num_scalar_prefetch=0,
            grid=(V_pad // tv, N_pad // tn, U_pad // tk),
            in_specs=[
                pl.BlockSpec((tk, tn), lambda i, j, k: (k, j)),
                pl.BlockSpec((tv, tk), lambda i, j, k: (i, k)),
                pl.BlockSpec((tv, 1), lambda i, j, k: (i, 0)),
            ],
            out_specs=pl.BlockSpec((tv, tn), lambda i, j, k: (i, j)),
            scratch_shapes=[pltpu.VMEM((tv, tn), jnp.float32)],
        ),
        compiler_params=pltpu.CompilerParams(
            dimension_semantics=("parallel", "parallel", "arbitrary"),
            vmem_limit_bytes=vmem_limit,
        ),
    )(x2p, w_p, b_p)
    out2 = out2[:V, :N]
    return out2.reshape(V, B, L).transpose(1, 0, 2)


# --------------------------------------------------------------------------- #
# Public wrapper
# --------------------------------------------------------------------------- #
def transposed_linear(x, weight, bias=None, *, compute_dtype=None):
    """x: (..., U, L), weight: (V, U), bias: (V, 1) or None -> (..., V, L).

    Pass compute_dtype=jnp.bfloat16 for ~4x MXU rate on v6e/v7x (f32 accum).
    """
    U, L = x.shape[-2], x.shape[-1]
    V, U_w = weight.shape
    assert U == U_w, "x.shape[-2] must equal weight.shape[-1]"
    lead = x.shape[:-2]
    B = int(math.prod(lead)) if lead else 1
    out_dtype = x.dtype

    if bias is None:
        b_f32 = jnp.zeros((V, 1), dtype=jnp.float32)
    else:
        b_f32 = jnp.asarray(bias).reshape(V, 1).astype(jnp.float32)

    if compute_dtype is not None:
        x = x.astype(compute_dtype)
        weight = weight.astype(compute_dtype)
    elif weight.dtype != x.dtype:
        weight = weight.astype(x.dtype)

    xb = x.reshape((B, U, L))

    phys = _vmem_phys_bytes()
    work_budget = min(int(phys * 0.5), 64 * 1024 * 1024)       # v7x ~32 MiB, v5e/v6e 64 MiB
    vmem_limit_cap = min(int(phys * 0.8), 100 * 1024 * 1024)   # v7x ~51 MiB, v5e/v6e 100 MiB

    out = None
    if L >= 128:
        out = _direct_path(xb, weight, b_f32, out_dtype, work_budget, vmem_limit_cap)
    if out is None:
        out = _folded_path(xb, weight, b_f32, out_dtype, work_budget, vmem_limit_cap)

    return out.reshape(lead + (V, L))


def init_params(key, d_input, d_output, dtype=jnp.float32):
    """Matches TransposedLinear.__init__ distributions."""
    k_w, k_b = jax.random.split(key)
    bound = 1.0 / math.sqrt(d_input)
    weight = jax.random.uniform(
        k_w, (d_output, d_input), dtype=dtype, minval=-bound, maxval=bound
    )
    bias = jax.random.uniform(
        k_b, (d_output, 1), dtype=dtype, minval=-bound, maxval=bound
    )
    return weight, bias


# --------------------------------------------------------------------------- #
# Self-test
# --------------------------------------------------------------------------- #
if __name__ == "__main__":
    HI = jax.lax.Precision.HIGHEST
    key = jax.random.PRNGKey(0)
    k_x1, k_p1, k_x2, k_p2, k_x3, k_p3 = jax.random.split(key, 6)

    # 1) Small L (< 128) -> folded lane-dense path (full-K, no reduction axis).
    B1, U1, L1, V1 = 2, 32, 16, 16
    x1 = jax.random.normal(k_x1, (B1, U1, L1), dtype=jnp.float32)
    w1, b1 = init_params(k_p1, d_input=U1, d_output=V1)
    out1 = jax.block_until_ready(transposed_linear(x1, w1, b1))
    ref1 = jnp.einsum("bul,vu->bvl", x1, w1, precision=HI) + b1[None]
    assert out1.shape == (B1, V1, L1)
    assert jnp.allclose(out1, ref1, atol=2e-3, rtol=2e-3), "folded path mismatch"

    # 2) L multiple of 128 -> direct (B, V, L) path, no wrapper transpose/pad.
    B2, U2, L2, V2 = 2, 96, 256, 40
    x2 = jax.random.normal(k_x2, (B2, U2, L2), dtype=jnp.float32)
    w2, b2 = init_params(k_p2, d_input=U2, d_output=V2)
    out2 = jax.block_until_ready(transposed_linear(x2, w2, b2))
    ref2 = jnp.einsum("bul,vu->bvl", x2, w2, precision=HI) + b2[None]
    assert out2.shape == (B2, V2, L2)
    assert jnp.allclose(out2, ref2, atol=2e-3, rtol=2e-3), "direct path mismatch"

    # 3) L >= 128 but not a multiple of 128 -> direct path with a full-L tile.
    B3, U3, L3, V3 = 4, 96, 160, 40
    x3 = jax.random.normal(k_x3, (B3, U3, L3), dtype=jnp.float32)
    w3, b3 = init_params(k_p3, d_input=U3, d_output=V3)
    out3 = jax.block_until_ready(transposed_linear(x3, w3, b3))
    ref3 = jnp.einsum("bul,vu->bvl", x3, w3, precision=HI) + b3[None]
    assert out3.shape == (B3, V3, L3)
    assert jnp.allclose(out3, ref3, atol=2e-3, rtol=2e-3), "full-L tile mismatch"

    # 4) Optional bf16 compute (f32 accumulation / f32 bias), loose tolerance.
    out_bf = jax.block_until_ready(
        transposed_linear(x2, w2, b2, compute_dtype=jnp.bfloat16)
    )
    assert jnp.allclose(out_bf, ref2, atol=1e-1, rtol=1e-1), "bf16 mismatch"

    print("KERNEL_OK")
</pallas_src>

<mosaic_0001>
module attributes {stable_mosaic.version = 11 : i64} {
  func.func @_matmul_bias_kernel(%arg0: i32, %arg1: i32, %arg2: memref<32x128xf32, #tpu.memory_space<vmem>>, %arg3: memref<16x32xf32, #tpu.memory_space<vmem>>, %arg4: memref<16x1xf32, #tpu.memory_space<vmem>>, %arg5: memref<16x128xf32, #tpu.memory_space<vmem>>) attributes {dimension_semantics = [#tpu.dimension_semantics<parallel>, #tpu.dimension_semantics<parallel>], iteration_bounds = array<i64: 1, 1>, scalar_prefetch = 0 : i64, scratch_operands = 0 : i64, tpu.core_type = #tpu.core_type<tc>, window_params = [{transform_indices = @transform_0, window_bounds = array<i64: 32, 128>}, {transform_indices = @transform_1, window_bounds = array<i64: 16, 32>}, {transform_indices = @transform_2, window_bounds = array<i64: 16, 1>}, {transform_indices = @transform_3, window_bounds = array<i64: 16, 128>}]} {
    %c0 = arith.constant 0 : index
    %c0_0 = arith.constant 0 : index
    %0 = vector.load %arg3[%c0, %c0_0] : memref<16x32xf32, #tpu.memory_space<vmem>>, vector<16x32xf32>
    %c0_1 = arith.constant 0 : index
    %c0_2 = arith.constant 0 : index
    %1 = vector.load %arg2[%c0_1, %c0_2] : memref<32x128xf32, #tpu.memory_space<vmem>>, vector<32x128xf32>
    %cst = arith.constant dense<0.000000e+00> : vector<16x128xf32>
    %2 = tpu.matmul %0, %1, %cst {dimension_numbers = #tpu.dot_dimension_numbers<[1], [0], [0], [1], [0, 0, 1, 1], [], []>} : vector<16x32xf32>, vector<32x128xf32>, vector<16x128xf32> -> vector<16x128xf32>
    %c0_3 = arith.constant 0 : index
    %c0_4 = arith.constant 0 : index
    %3 = vector.load %arg4[%c0_3, %c0_4] : memref<16x1xf32, #tpu.memory_space<vmem>>, vector<16x1xf32>
    %4 = vector.broadcast %3 : vector<16x1xf32> to vector<16x128xf32>
    %5 = arith.addf %2, %4 : vector<16x128xf32>
    %c0_5 = arith.constant 0 : index
    %c0_6 = arith.constant 0 : index
    %6 = vector.load %arg5[%c0_5, %c0_6] : memref<16x128xf32, #tpu.memory_space<vmem>>, vector<16x128xf32>
    tpu.vector_store %arg5[%c0_5, %c0_6], %5 {strides = array<i32>} : memref<16x128xf32, #tpu.memory_space<vmem>>, vector<16x128xf32>,
    return
  }
  func.func @transform_0(%arg0: i32, %arg1: i32) -> (i32, i32) {
    %c0_i32 = arith.constant 0 : i32
    %c0_i32_0 = arith.constant 0 : i32
    return %c0_i32, %arg1 : i32, i32
  }
  func.func @transform_1(%arg0: i32, %arg1: i32) -> (i32, i32) {
    %c0_i32 = arith.constant 0 : i32
    %c0_i32_0 = arith.constant 0 : i32
    return %arg0, %c0_i32 : i32, i32
  }
  func.func @transform_2(%arg0: i32, %arg1: i32) -> (i32, i32) {
    %c0_i32 = arith.constant 0 : i32
    %c0_i32_0 = arith.constant 0 : i32
    return %arg0, %c0_i32 : i32, i32
  }
  func.func @transform_3(%arg0: i32, %arg1: i32) -> (i32, i32) {
    %c0_i32 = arith.constant 0 : i32
    return %arg0, %arg1 : i32, i32
  }
}

</mosaic_0001>

<llo_original>
// kernel: tpu_custom_call.1
$region0: #{tpu_custom_call.1}
  #allocation0 [shape = 'u32[]', space=smem, size = 0x4, offset = 0x4, fixed_abs, tag = 'smem constant byte address 0x4 - core index']
  #allocation1 [shape = 'u32[72,128]{1,0:T(1,128)}', space=vmem, size = 0x9000, scoped, tag = 'internal scratch']
  %s0 = inlined_call_operand.hbm [shape: f32[32,128], index: 0, kind: input, shape index: {}]
  %s1 = inlined_call_operand.vmem [shape: f32[16,32], index: 1, kind: input, shape index: {}]
  %s2 = inlined_call_operand.vmem [shape: f32[16,1], index: 2, kind: input, shape index: {}]
  %s3 = inlined_call_operand.hbm [shape: f32[16,128], index: 3, kind: output, shape index: {}]
  %s4 = sld [smem:[#allocation0]]
  $region26: #{tpu_custom_call.1} parent=0
    _
  %s6 = ssub.s32 1, %s4
  %s7 = scalar_select 0, %s6, %s4
  $region1: #{tpu_custom_call.1} parent=0
    #allocation2 [shape = 'u8[16384]{0}', space=vmem, size = 0x4000, scoped, tag = 'input window, operand 0, single buffered']
    #allocation3 [shape = 's32[1]{0}', space=sflag, size = 0x4, scoped, tag = 'scoped memory for tpu_custom_call.1']
    #allocation4 [shape = 's32[1]{0}', space=sflag, size = 0x4, scoped, tag = 'scoped memory for tpu_custom_call.1']
    #allocation5 [shape = 'u8[8192]{0}', space=vmem, size = 0x2000, scoped, tag = 'output window, operand 0, single buffered']
    %8 = vsyncpa [#allocation3], 0
    %9 = vsyncpa [#allocation4], 0
    // Predicated region
    $region2: #{tpu_custom_call.1} parent=1 // pred_check
      _
    $region3: #{tpu_custom_call.1} parent=1 // pred_check_branch
      %11 = sbr.rel (0) target = $region5
    $region4: #{tpu_custom_call.1} parent=1 // pred_region
      %13 = vsyncadd [#allocation3], 0
      %s14 = sshll.u32 %s0, 4
      %s15 = int_to_ptr.hbm [resolvable:$true] %s14
      %s16 = sshll.u32 [#allocation2], 4
      %s17 = int_to_ptr.vmem [resolvable:$true] %s16
      %22 = dma.hbm_to_vmem [thread:$0]  %s15, 512, %s17, [#allocation3], 128, 128, 8
    $region5: #{tpu_custom_call.1} parent=1 // pred_fallthru
      _
    // Predicated region
    $region6: #{tpu_custom_call.1} parent=1 // pred_check
      _
    $region7: #{tpu_custom_call.1} parent=1 // pred_check_branch
      %24 = sbr.rel (0) target = $region9
    $region8: #{tpu_custom_call.1} parent=1 // pred_region
      _
    $region9: #{tpu_custom_call.1} parent=1 // pred_fallthru
      _
    // Predicated region
    $region10: #{tpu_custom_call.1} parent=1 // pred_check
      _
    $region11: #{tpu_custom_call.1} parent=1 // pred_check_branch
      %26 = sbr.rel (0) target = $region13
    $region12: #{tpu_custom_call.1} parent=1 // pred_region
      _
    $region13: #{tpu_custom_call.1} parent=1 // pred_fallthru
      _
    // Predicated region
    $region14: #{tpu_custom_call.1} parent=1 // pred_check
      _
    $region15: #{tpu_custom_call.1} parent=1 // pred_check_branch
      %28 = sbr.rel (0) target = $region17
    $region16: #{tpu_custom_call.1} parent=1 // pred_region
      %30 = dma.done [#allocation3], 512
    $region17: #{tpu_custom_call.1} parent=1 // pred_fallthru
      _
    %v31 = vld [vmem:[%s1] sm:$0xff]
    %v32 = vld [vmem:[%s1 + $0x8] sm:$0xff]
    %v33 = vld [vmem:[#allocation2] sm:$0xff]
    %v34 = vld [vmem:[#allocation2 + $0x8] sm:$0xff]
    %v35 = vld [vmem:[#allocation2 + $0x10] sm:$0xff]
    %v36 = vld [vmem:[#allocation2 + $0x18] sm:$0xff]
    %v37 = vld [vmem:[%s2] sm:$0xff]
    %v38 = vld [vmem:[%s2 + $0x8] sm:$0xff]
    %40 = vset.pattern.permute.xlu0 0
    %41 = vperm.xlu0 %40, %v37
    %v42 = vpop.permute.xlu0 %41
    %45 = vset.pattern.permute.xlu0 0
    %46 = vperm.xlu0 %45, %v38
    %v47 = vpop.permute.xlu0 %46
    %vm49 = vcmask 261120
    %v51 = vsel %vm49, %v31, 0
    %v54 = vsel %vm49, %v32, 0
    %56 = vmatpush.msra.mxu0 0.0
    %57 = vmatpush.msra.mxu0 0.0
    %58 = vmatpush.msra.mxu0 0.0
    %59 = vmatpush.msra.mxu0 0.0
    %60 = vmatpush.msra.mxu0 0.0
    %61 = vmatpush.msra.mxu0 0.0
    %62 = vmatpush.msra.mxu0 0.0
    %63 = vmatpush.msra.mxu0 0.0
    %64 = vmatpush.msra.mxu0 0.0
    %65 = vmatpush.msra.mxu0 0.0
    %66 = vmatpush.msra.mxu0 0.0
    %67 = vmatpush.msra.mxu0 0.0
    %68 = vmatpush.msra.mxu0 %v36
    %69 = vmatpush.msra.mxu0 %v35
    %70 = vmatpush.msra.mxu0 %v34
    %71 = vmatpush.msra.mxu0 %v33
    %72 = vmatmul.f32.gmra.mxu0 %v51
    %v73 = vpop.f32.mrf.mxu0
    %v74 = vadd.f32 %v42, %v73
    %75 = vmatmul.f32.gmra.mxu0 %v54
    %v76 = vpop.f32.mrf.mxu0
    %v77 = vadd.f32 %v47, %v76
    %78 = vdwg.mxu0
    %79 = vst [vmem:[#allocation5] sm:$0xff] %v74
    %80 = vst [vmem:[#allocation5 + $0x8] sm:$0xff] %v77
    // Predicated region
    $region18: #{tpu_custom_call.1} parent=1 // pred_check
      _
    $region19: #{tpu_custom_call.1} parent=1 // pred_check_branch
      %82 = sbr.rel (0) target = $region21
    $region20: #{tpu_custom_call.1} parent=1 // pred_region
      %84 = vsyncadd [#allocation4], 0
      %s85 = sshll.u32 [#allocation5], 4
      %s86 = int_to_ptr.vmem [resolvable:$true] %s85
      %s87 = sshll.u32 %s3, 4
      %s88 = int_to_ptr.hbm [resolvable:$true] %s87
      %93 = dma.vmem_to_hbm [thread:$0]  %s86, 256, %s88, [#allocation4], 128, 128, 8
    $region21: #{tpu_custom_call.1} parent=1 // pred_fallthru
      _
    // Predicated region
    $region22: #{tpu_custom_call.1} parent=1 // pred_check
      _
    $region23: #{tpu_custom_call.1} parent=1 // pred_check_branch
      %95 = sbr.rel (0) target = $region25
    $region24: #{tpu_custom_call.1} parent=1 // pred_region
      %97 = dma.done [#allocation4], 256
    $region25: #{tpu_custom_call.1} parent=1 // pred_fallthru
      _
    %98 = vsyncpa [#allocation3], 1
    %99 = vsyncpa [#allocation4], 1

</llo_original>
